<compile_context>
chip_gen: v6e
topology: v6e:2x2x1
jax: 0.10.0
libtpu: 0.0.40
codegen_flags: <defaults>
</compile_context>

<pallas_src>
import jax
import jax.numpy as jnp
from jax.experimental import pallas as pl
from jax.experimental.pallas import tpu as pltpu

BN_EPS = 1e-5


def coordatt_kernel(x_ref, sel_h_ref, sel_w_ref, bcast_h_ref, bcast_w_ref,
                    w1_ref, b1_ref, wh_ref, bh_ref, ww_ref, bw_ref, out_ref):
    # x_ref block: (B_blk, C, H*W), lane-dense.
    b_blk = x_ref.shape[0]
    H = sel_h_ref.shape[1]
    W = sel_w_ref.shape[1]
    inv_w = 1.0 / W
    inv_h = 1.0 / H

    # Hoist constant loads out of the per-sample loop.
    w1 = w1_ref[...]        # (MIP, C)  bf16, BN folded
    b1 = b1_ref[...]        # (MIP, 1)  f32, BN folded
    wh = wh_ref[...]        # (C,  MIP) bf16
    bh = bh_ref[...]        # (C,  1)   f32
    ww = ww_ref[...]        # (C,  MIP) bf16
    bw = bw_ref[...]        # (C,  1)   f32
    sel_h = sel_h_ref[...]  # (HW, H)   bf16 0/1
    sel_w = sel_w_ref[...]  # (HW, W)   bf16 0/1
    bc_h = bcast_h_ref[...]  # (H, HW)  bf16 0/1
    bc_w = bcast_w_ref[...]  # (W, HW)  bf16 0/1

    for b in range(b_blk):  # static unroll over the small batch block
        x = x_ref[b]                                   # (C, HW), io dtype
        x_bf = x.astype(jnp.bfloat16)

        # conv1 applied BEFORE pooling (linearity) -- single big MXU pass.
        t = jnp.dot(w1, x_bf, preferred_element_type=jnp.float32)       # (MIP, HW)

        # Coordinate pooling on the MXU via exact 0/1 selection matrices.
        t_bf = t.astype(jnp.bfloat16)
        yh = jnp.dot(t_bf, sel_h, preferred_element_type=jnp.float32) * inv_w + b1  # (MIP, H)
        yw = jnp.dot(t_bf, sel_w, preferred_element_type=jnp.float32) * inv_h + b1  # (MIP, W)

        # h_swish in f32 (keep elementwise math off bf16 for v5e).
        yh = yh * (jnp.clip(yh + 3.0, 0.0, 6.0) * (1.0 / 6.0))
        yw = yw * (jnp.clip(yw + 3.0, 0.0, 6.0) * (1.0 / 6.0))

        # conv_h / conv_w (1x1 convs) + sigmoid.
        a_h = jax.nn.sigmoid(
            jnp.dot(wh, yh.astype(jnp.bfloat16),
                    preferred_element_type=jnp.float32) + bh)            # (C, H)
        a_w = jax.nn.sigmoid(
            jnp.dot(ww, yw.astype(jnp.bfloat16),
                    preferred_element_type=jnp.float32) + bw)            # (C, W)

        # Broadcast attention back to the lane-dense (C, HW) layout on the MXU.
        ah_full = jnp.dot(a_h.astype(jnp.bfloat16), bc_h,
                          preferred_element_type=jnp.float32)            # (C, HW)
        aw_full = jnp.dot(a_w.astype(jnp.bfloat16), bc_w,
                          preferred_element_type=jnp.float32)            # (C, HW)

        # out = identity * a_w * a_h (f32 math, unmasked lane-dense store).
        out_ref[b] = (x.astype(jnp.float32) * ah_full * aw_full).astype(out_ref.dtype)


def _selection_matrices(H, W, dtype=jnp.bfloat16):
    """Exact 0/1 pooling / broadcast matrices for the flattened H*W lane axis."""
    hw = H * W
    lin = jnp.arange(hw, dtype=jnp.int32)
    row = lin // W                     # h index of flattened position
    col = lin % W                      # w index of flattened position
    sel_h = (row[:, None] == jnp.arange(H, dtype=jnp.int32)[None, :]).astype(dtype)  # (HW, H)
    sel_w = (col[:, None] == jnp.arange(W, dtype=jnp.int32)[None, :]).astype(dtype)  # (HW, W)
    return sel_h, sel_w, sel_h.T, sel_w.T


def _vmem_capacity_bytes():
    try:
        info = pltpu.get_tpu_info()
        cap = getattr(info, "vmem_capacity_bytes", None)
        if cap:
            return int(cap)
    except Exception:
        pass
    return 64 << 20  # conservative: v7x per-TensorCore VMEM


def coord_att(x, params, io_dtype=None, block_batch_bytes=1 << 20):
    """x: (N, C, H, W); params: dict of kernel parameters.

    io_dtype: dtype of the HBM slabs (default x.dtype).  jnp.bfloat16 halves
    HBM traffic (the kernel is HBM-bound on v6e/v7x) at a small accuracy cost.
    """
    N, C, H, W = x.shape
    hw = H * W
    w1, b1 = params["w1"], params["b1"]
    gamma, beta = params["bn_gamma"], params["bn_beta"]
    mean, var = params["bn_mean"], params["bn_var"]
    wh, bh, ww, bw = params["wh"], params["bh"], params["ww"], params["bw"]
    mip = w1.shape[0]
    oup = wh.shape[0]
    assert oup == C, "CoordAtt identity multiply requires oup == inp (== C)"

    # Fold eval-mode BatchNorm (and the conv1 bias) into the conv1 weights.
    scale = gamma * jax.lax.rsqrt(var + BN_EPS)                 # (MIP, 1)
    w1f = (scale * w1).astype(jnp.bfloat16)                     # (MIP, C)
    b1f = (scale * (b1 - mean) + beta).astype(jnp.float32)      # (MIP, 1)
    wh_bf = wh.astype(jnp.bfloat16)
    ww_bf = ww.astype(jnp.bfloat16)
    bh_f = bh.astype(jnp.float32)
    bw_f = bw.astype(jnp.float32)

    sel_h, sel_w, bc_h, bc_w = _selection_matrices(H, W)

    io_dtype = x.dtype if io_dtype is None else io_dtype
    io_bytes = jnp.dtype(io_dtype).itemsize
    x2d = x.reshape(N, C, hw).astype(io_dtype)                  # free reshape + optional cast
    slab = C * hw * io_bytes

    # Batch several samples per grid step when slabs are tiny (amortize the
    # ~0.35us per-step overhead), but keep >= 2 grid steps when N >= 2 so both
    # v7x TensorCores have work.
    max_blk = max(1, N // 2) if N >= 2 else 1
    b_blk = 1
    for d in range(1, max_blk + 1):
        if N % d == 0 and d * slab <= block_batch_bytes:
            b_blk = d

    # VMEM budget: double-buffered in/out slabs + double-buffered constants +
    # in-kernel f32 intermediates (t, ah_full, aw_full, f32 copy of x) + slack.
    const_bytes = (2 * hw * (H + W)) * 2                        # sel/bcast, bf16
    const_bytes += (mip * C + 2 * C * mip) * 2                  # weights, bf16
    const_bytes += (mip + 2 * C) * 4                            # biases, f32
    io_block = b_blk * slab
    interm = (mip + 3 * C) * hw * 4
    vmem_needed = 2 * (2 * io_block) + 2 * const_bytes + b_blk * interm + (4 << 20)
    cap = _vmem_capacity_bytes()
    vmem_bytes = int(min(max(vmem_needed, 16 << 20), cap - (8 << 20)))

    flops_per_n = (2 * mip * C * hw            # conv1 big pass (before pooling)
                   + 2 * mip * hw * (H + W)    # pooling dots
                   + 2 * C * mip * (H + W)     # conv_h / conv_w
                   + 2 * C * hw * (H + W)      # broadcast dots
                   + 3 * C * hw)               # final elementwise
    cost = pl.CostEstimate(
        flops=int(N * flops_per_n),
        transcendentals=int(N * C * (H + W)),
        bytes_accessed=int(2 * N * slab + const_bytes))

    const2d = lambda a: pl.BlockSpec(a.shape, lambda i: (0, 0))

    out2d = pl.pallas_call(
        coordatt_kernel,
        out_shape=jax.ShapeDtypeStruct((N, C, hw), io_dtype),
        grid_spec=pltpu.PrefetchScalarGridSpec(
            num_scalar_prefetch=0,
            grid=(N // b_blk,),
            in_specs=[
                pl.BlockSpec((b_blk, C, hw), lambda i: (i, 0, 0)),  # x (lane-dense)
                const2d(sel_h),     # (HW, H) 0/1 select-by-row
                const2d(sel_w),     # (HW, W) 0/1 select-by-col
                const2d(bc_h),      # (H, HW) broadcast a_h
                const2d(bc_w),      # (W, HW) broadcast a_w
                const2d(w1f),       # conv1 weight with BN folded (MIP, C)
                const2d(b1f),       # folded bias (MIP, 1)
                const2d(wh_bf),     # conv_h weight (C, MIP)
                const2d(bh_f),      # conv_h bias   (C, 1)
                const2d(ww_bf),     # conv_w weight (C, MIP)
                const2d(bw_f),      # conv_w bias   (C, 1)
            ],
            out_specs=pl.BlockSpec((b_blk, C, hw), lambda i: (i, 0, 0)),
        ),
        compiler_params=pltpu.CompilerParams(
            dimension_semantics=("parallel",),
            vmem_limit_bytes=vmem_bytes),
        cost_estimate=cost,
    )(x2d, sel_h, sel_w, bc_h, bc_w, w1f, b1f, wh_bf, bh_f, ww_bf, bw_f)

    return out2d.reshape(N, C, H, W)


def make_params(key, inp, oup, reduction=32):
    mip = max(8, inp // reduction)
    ks = jax.random.split(key, 8)
    f32 = jnp.float32
    return {
        "w1": jax.random.normal(ks[0], (mip, inp), f32) * 0.2,
        "b1": jax.random.normal(ks[1], (mip, 1), f32) * 0.05,
        "bn_gamma": 1.0 + 0.1 * jax.random.normal(ks[2], (mip, 1), f32),
        "bn_beta": 0.05 * jax.random.normal(ks[3], (mip, 1), f32),
        "bn_mean": jnp.zeros((mip, 1), f32),
        "bn_var": jnp.ones((mip, 1), f32),
        "wh": jax.random.normal(ks[4], (oup, mip), f32) * 0.2,
        "bh": jax.random.normal(ks[5], (oup, 1), f32) * 0.05,
        "ww": jax.random.normal(ks[6], (oup, mip), f32) * 0.2,
        "bw": jax.random.normal(ks[7], (oup, 1), f32) * 0.05,
    }


def coord_att_ref(x, p):
    """Pure-JAX reference mirroring the PyTorch forward (eval-mode BN, unfolded, f32)."""
    n, c, h, w = x.shape
    x_h = jnp.mean(x, axis=3)                 # (n, c, h)
    x_w = jnp.mean(x, axis=2)                 # (n, c, w)
    y = jnp.concatenate([x_h, x_w], axis=2)   # (n, c, h+w)
    y = jnp.einsum("mc,ncl->nml", p["w1"], y) + p["b1"][None, :, 0, None]
    inv = 1.0 / jnp.sqrt(p["bn_var"][:, 0] + BN_EPS)
    y = (y - p["bn_mean"][None, :, 0, None]) * (inv * p["bn_gamma"][:, 0])[None, :, None] \
        + p["bn_beta"][None, :, 0, None]
    y = y * jnp.clip(y + 3.0, 0.0, 6.0) / 6.0
    yh, yw = y[:, :, :h], y[:, :, h:]
    a_h = jax.nn.sigmoid(jnp.einsum("om,nml->nol", p["wh"], yh) + p["bh"][None, :, 0, None])
    a_w = jax.nn.sigmoid(jnp.einsum("om,nml->nol", p["ww"], yw) + p["bw"][None, :, 0, None])
    return x * a_w[:, :, None, :] * a_h[:, :, :, None]


if __name__ == "__main__":
    N, C, H, W = 2, 4, 16, 16        # inp = oup = C (identity multiply needs oup == inp)
    key = jax.random.PRNGKey(0)
    kx, kp = jax.random.split(key)
    x = jax.random.normal(kx, (N, C, H, W), jnp.float32)
    params = make_params(kp, inp=C, oup=C, reduction=32)

    ref = coord_att_ref(x, params)

    # f32 I/O slabs (bf16 only on MXU operands inside the kernel) -- tight check.
    out = jax.block_until_ready(coord_att(x, params))
    assert out.shape == (N, C, H, W)
    assert jnp.allclose(out, ref, atol=5e-3, rtol=5e-3), "f32-I/O mismatch vs reference"

    # bf16 I/O slabs (halves HBM bytes; dominant lever on v6e/v7x) -- looser check.
    out_bf = jax.block_until_ready(coord_att(x, params, io_dtype=jnp.bfloat16))
    assert out_bf.shape == (N, C, H, W)
    assert jnp.allclose(out_bf.astype(jnp.float32), ref, atol=5e-2, rtol=5e-2), \
        "bf16-I/O mismatch vs reference"

    print("KERNEL_OK")
</pallas_src>

<mosaic_0001>
module attributes {stable_mosaic.version = 11 : i64} {
  func.func @coordatt_kernel(%arg0: i32, %arg1: memref<1x4x256xf32, #tpu.memory_space<vmem>>, %arg2: memref<256x16xbf16, #tpu.memory_space<vmem>>, %arg3: memref<256x16xbf16, #tpu.memory_space<vmem>>, %arg4: memref<16x256xbf16, #tpu.memory_space<vmem>>, %arg5: memref<16x256xbf16, #tpu.memory_space<vmem>>, %arg6: memref<8x4xbf16, #tpu.memory_space<vmem>>, %arg7: memref<8x1xf32, #tpu.memory_space<vmem>>, %arg8: memref<4x8xbf16, #tpu.memory_space<vmem>>, %arg9: memref<4x1xf32, #tpu.memory_space<vmem>>, %arg10: memref<4x8xbf16, #tpu.memory_space<vmem>>, %arg11: memref<4x1xf32, #tpu.memory_space<vmem>>, %arg12: memref<1x4x256xf32, #tpu.memory_space<vmem>>) attributes {dimension_semantics = [#tpu.dimension_semantics<parallel>], iteration_bounds = array<i64: 2>, scalar_prefetch = 0 : i64, scratch_operands = 0 : i64, tpu.core_type = #tpu.core_type<tc>, window_params = [{transform_indices = @transform_0, window_bounds = array<i64: 1, 4, 256>}, {pipeline_mode = #tpu.pipeline_mode<synchronous>, transform_indices = @transform_1, window_bounds = array<i64: 256, 16>}, {pipeline_mode = #tpu.pipeline_mode<synchronous>, transform_indices = @transform_2, window_bounds = array<i64: 256, 16>}, {pipeline_mode = #tpu.pipeline_mode<synchronous>, transform_indices = @transform_3, window_bounds = array<i64: 16, 256>}, {pipeline_mode = #tpu.pipeline_mode<synchronous>, transform_indices = @transform_4, window_bounds = array<i64: 16, 256>}, {pipeline_mode = #tpu.pipeline_mode<synchronous>, transform_indices = @transform_5, window_bounds = array<i64: 8, 4>}, {pipeline_mode = #tpu.pipeline_mode<synchronous>, transform_indices = @transform_6, window_bounds = array<i64: 8, 1>}, {pipeline_mode = #tpu.pipeline_mode<synchronous>, transform_indices = @transform_7, window_bounds = array<i64: 4, 8>}, {pipeline_mode = #tpu.pipeline_mode<synchronous>, transform_indices = @transform_8, window_bounds = array<i64: 4, 1>}, {pipeline_mode = #tpu.pipeline_mode<synchronous>, transform_indices = @transform_9, window_bounds = array<i64: 4, 8>}, {pipeline_mode = #tpu.pipeline_mode<synchronous>, transform_indices = @transform_10, window_bounds = array<i64: 4, 1>}, {transform_indices = @transform_11, window_bounds = array<i64: 1, 4, 256>}]} {
    %c0 = arith.constant 0 : index
    %c0_0 = arith.constant 0 : index
    %0 = vector.load %arg6[%c0, %c0_0] : memref<8x4xbf16, #tpu.memory_space<vmem>>, vector<8x4xbf16>
    %c0_1 = arith.constant 0 : index
    %c0_2 = arith.constant 0 : index
    %1 = vector.load %arg7[%c0_1, %c0_2] : memref<8x1xf32, #tpu.memory_space<vmem>>, vector<8x1xf32>
    %c0_3 = arith.constant 0 : index
    %c0_4 = arith.constant 0 : index
    %2 = vector.load %arg8[%c0_3, %c0_4] : memref<4x8xbf16, #tpu.memory_space<vmem>>, vector<4x8xbf16>
    %c0_5 = arith.constant 0 : index
    %c0_6 = arith.constant 0 : index
    %3 = vector.load %arg9[%c0_5, %c0_6] : memref<4x1xf32, #tpu.memory_space<vmem>>, vector<4x1xf32>
    %c0_7 = arith.constant 0 : index
    %c0_8 = arith.constant 0 : index
    %4 = vector.load %arg10[%c0_7, %c0_8] : memref<4x8xbf16, #tpu.memory_space<vmem>>, vector<4x8xbf16>
    %c0_9 = arith.constant 0 : index
    %c0_10 = arith.constant 0 : index
    %5 = vector.load %arg11[%c0_9, %c0_10] : memref<4x1xf32, #tpu.memory_space<vmem>>, vector<4x1xf32>
    %c0_11 = arith.constant 0 : index
    %c0_12 = arith.constant 0 : index
    %6 = vector.load %arg2[%c0_11, %c0_12] : memref<256x16xbf16, #tpu.memory_space<vmem>>, vector<256x16xbf16>
    %c0_13 = arith.constant 0 : index
    %c0_14 = arith.constant 0 : index
    %7 = vector.load %arg3[%c0_13, %c0_14] : memref<256x16xbf16, #tpu.memory_space<vmem>>, vector<256x16xbf16>
    %c0_15 = arith.constant 0 : index
    %c0_16 = arith.constant 0 : index
    %8 = vector.load %arg4[%c0_15, %c0_16] : memref<16x256xbf16, #tpu.memory_space<vmem>>, vector<16x256xbf16>
    %c0_17 = arith.constant 0 : index
    %c0_18 = arith.constant 0 : index
    %9 = vector.load %arg5[%c0_17, %c0_18] : memref<16x256xbf16, #tpu.memory_space<vmem>>, vector<16x256xbf16>
    %c0_19 = arith.constant 0 : index
    %c0_20 = arith.constant 0 : index
    %c0_21 = arith.constant 0 : index
    %10 = vector.load %arg1[%c0_19, %c0_20, %c0_21] : memref<1x4x256xf32, #tpu.memory_space<vmem>>, vector<1x4x256xf32>
    %11 = vector.shape_cast %10 : vector<1x4x256xf32> to vector<4x256xf32>
    %12 = arith.truncf %11 : vector<4x256xf32> to vector<4x256xbf16>
    %cst = arith.constant dense<0.000000e+00> : vector<8x256xf32>
    %13 = tpu.matmul %0, %12, %cst {dimension_numbers = #tpu.dot_dimension_numbers<[1], [0], [0], [1], [0, 0, 1, 1], [], []>} : vector<8x4xbf16>, vector<4x256xbf16>, vector<8x256xf32> -> vector<8x256xf32>
    %14 = arith.truncf %13 : vector<8x256xf32> to vector<8x256xbf16>
    %cst_22 = arith.constant dense<0.000000e+00> : vector<8x16xf32>
    %15 = tpu.matmul %14, %6, %cst_22 {dimension_numbers = #tpu.dot_dimension_numbers<[1], [0], [0], [1], [0, 0, 1, 1], [], []>} : vector<8x256xbf16>, vector<256x16xbf16>, vector<8x16xf32> -> vector<8x16xf32>
    %cst_23 = arith.constant 6.250000e-02 : f32
    %16 = vector.broadcast %cst_23 : f32 to vector<8x16xf32>
    %17 = arith.mulf %15, %16 : vector<8x16xf32>
    %18 = vector.broadcast %1 : vector<8x1xf32> to vector<8x16xf32>
    %19 = arith.addf %17, %18 : vector<8x16xf32>
    %cst_24 = arith.constant dense<0.000000e+00> : vector<8x16xf32>
    %20 = tpu.matmul %14, %7, %cst_24 {dimension_numbers = #tpu.dot_dimension_numbers<[1], [0], [0], [1], [0, 0, 1, 1], [], []>} : vector<8x256xbf16>, vector<256x16xbf16>, vector<8x16xf32> -> vector<8x16xf32>
    %cst_25 = arith.constant 6.250000e-02 : f32
    %21 = vector.broadcast %cst_25 : f32 to vector<8x16xf32>
    %22 = arith.mulf %20, %21 : vector<8x16xf32>
    %23 = vector.broadcast %1 : vector<8x1xf32> to vector<8x16xf32>
    %24 = arith.addf %22, %23 : vector<8x16xf32>
    %cst_26 = arith.constant 3.000000e+00 : f32
    %25 = vector.broadcast %cst_26 : f32 to vector<8x16xf32>
    %26 = arith.addf %19, %25 : vector<8x16xf32>
    %cst_27 = arith.constant 0.000000e+00 : f32
    %cst_28 = arith.constant 6.000000e+00 : f32
    %27 = vector.broadcast %cst_27 : f32 to vector<8x16xf32>
    %28 = arith.maximumf %27, %26 : vector<8x16xf32>
    %29 = vector.broadcast %cst_28 : f32 to vector<8x16xf32>
    %30 = arith.minimumf %29, %28 : vector<8x16xf32>
    %cst_29 = arith.constant 0.166666672 : f32
    %31 = vector.broadcast %cst_29 : f32 to vector<8x16xf32>
    %32 = arith.mulf %30, %31 : vector<8x16xf32>
    %33 = arith.mulf %19, %32 : vector<8x16xf32>
    %cst_30 = arith.constant 3.000000e+00 : f32
    %34 = vector.broadcast %cst_30 : f32 to vector<8x16xf32>
    %35 = arith.addf %24, %34 : vector<8x16xf32>
    %cst_31 = arith.constant 0.000000e+00 : f32
    %cst_32 = arith.constant 6.000000e+00 : f32
    %36 = vector.broadcast %cst_31 : f32 to vector<8x16xf32>
    %37 = arith.maximumf %36, %35 : vector<8x16xf32>
    %38 = vector.broadcast %cst_32 : f32 to vector<8x16xf32>
    %39 = arith.minimumf %38, %37 : vector<8x16xf32>
    %cst_33 = arith.constant 0.166666672 : f32
    %40 = vector.broadcast %cst_33 : f32 to vector<8x16xf32>
    %41 = arith.mulf %39, %40 : vector<8x16xf32>
    %42 = arith.mulf %24, %41 : vector<8x16xf32>
    %43 = arith.truncf %33 : vector<8x16xf32> to vector<8x16xbf16>
    %cst_34 = arith.constant dense<0.000000e+00> : vector<4x16xf32>
    %44 = tpu.matmul %2, %43, %cst_34 {dimension_numbers = #tpu.dot_dimension_numbers<[1], [0], [0], [1], [0, 0, 1, 1], [], []>} : vector<4x8xbf16>, vector<8x16xbf16>, vector<4x16xf32> -> vector<4x16xf32>
    %45 = vector.broadcast %3 : vector<4x1xf32> to vector<4x16xf32>
    %46 = arith.addf %44, %45 : vector<4x16xf32>
    %47 = arith.negf %46 : vector<4x16xf32>
    %48 = math.exp %47 : vector<4x16xf32>
    %cst_35 = arith.constant 1.000000e+00 : f32
    %49 = vector.broadcast %cst_35 : f32 to vector<4x16xf32>
    %50 = arith.addf %49, %48 : vector<4x16xf32>
    %51 = arith.divf %49, %50 : vector<4x16xf32>
    %52 = arith.truncf %42 : vector<8x16xf32> to vector<8x16xbf16>
    %cst_36 = arith.constant dense<0.000000e+00> : vector<4x16xf32>
    %53 = tpu.matmul %4, %52, %cst_36 {dimension_numbers = #tpu.dot_dimension_numbers<[1], [0], [0], [1], [0, 0, 1, 1], [], []>} : vector<4x8xbf16>, vector<8x16xbf16>, vector<4x16xf32> -> vector<4x16xf32>
    %54 = vector.broadcast %5 : vector<4x1xf32> to vector<4x16xf32>
    %55 = arith.addf %53, %54 : vector<4x16xf32>
    %56 = arith.negf %55 : vector<4x16xf32>
    %57 = math.exp %56 : vector<4x16xf32>
    %cst_37 = arith.constant 1.000000e+00 : f32
    %58 = vector.broadcast %cst_37 : f32 to vector<4x16xf32>
    %59 = arith.addf %58, %57 : vector<4x16xf32>
    %60 = arith.divf %58, %59 : vector<4x16xf32>
    %61 = arith.truncf %51 : vector<4x16xf32> to vector<4x16xbf16>
    %cst_38 = arith.constant dense<0.000000e+00> : vector<4x256xf32>
    %62 = tpu.matmul %61, %8, %cst_38 {dimension_numbers = #tpu.dot_dimension_numbers<[1], [0], [0], [1], [0, 0, 1, 1], [], []>} : vector<4x16xbf16>, vector<16x256xbf16>, vector<4x256xf32> -> vector<4x256xf32>
    %63 = arith.truncf %60 : vector<4x16xf32> to vector<4x16xbf16>
    %cst_39 = arith.constant dense<0.000000e+00> : vector<4x256xf32>
    %64 = tpu.matmul %63, %9, %cst_39 {dimension_numbers = #tpu.dot_dimension_numbers<[1], [0], [0], [1], [0, 0, 1, 1], [], []>} : vector<4x16xbf16>, vector<16x256xbf16>, vector<4x256xf32> -> vector<4x256xf32>
    %65 = arith.mulf %11, %62 : vector<4x256xf32>
    %66 = arith.mulf %65, %64 : vector<4x256xf32>
    %c0_40 = arith.constant 0 : index
    %c0_41 = arith.constant 0 : index
    %c0_42 = arith.constant 0 : index
    %67 = vector.load %arg12[%c0_40, %c0_41, %c0_42] : memref<1x4x256xf32, #tpu.memory_space<vmem>>, vector<1x4x256xf32>
    %68 = vector.shape_cast %67 : vector<1x4x256xf32> to vector<4x256xf32>
    %69 = vector.shape_cast %66 : vector<4x256xf32> to vector<1x4x256xf32>
    tpu.vector_store %arg12[%c0_40, %c0_41, %c0_42], %69 {strides = array<i32>} : memref<1x4x256xf32, #tpu.memory_space<vmem>>, vector<1x4x256xf32>,
    return
  }
  func.func @transform_0(%arg0: i32) -> (i32, i32, i32) {
    %c0_i32 = arith.constant 0 : i32
    %c0_i32_0 = arith.constant 0 : i32
    %c0_i32_1 = arith.constant 0 : i32
    return %arg0, %c0_i32, %c0_i32_0 : i32, i32, i32
  }
  func.func @transform_1(%arg0: i32) -> (i32, i32) {
    %c0_i32 = arith.constant 0 : i32
    %c0_i32_0 = arith.constant 0 : i32
    %c0_i32_1 = arith.constant 0 : i32
    return %c0_i32, %c0_i32_0 : i32, i32
  }
  func.func @transform_2(%arg0: i32) -> (i32, i32) {
    %c0_i32 = arith.constant 0 : i32
    %c0_i32_0 = arith.constant 0 : i32
    %c0_i32_1 = arith.constant 0 : i32
    return %c0_i32, %c0_i32_0 : i32, i32
  }
  func.func @transform_3(%arg0: i32) -> (i32, i32) {
    %c0_i32 = arith.constant 0 : i32
    %c0_i32_0 = arith.constant 0 : i32
    %c0_i32_1 = arith.constant 0 : i32
    return %c0_i32, %c0_i32_0 : i32, i32
  }
  func.func @transform_4(%arg0: i32) -> (i32, i32) {
    %c0_i32 = arith.constant 0 : i32
    %c0_i32_0 = arith.constant 0 : i32
    %c0_i32_1 = arith.constant 0 : i32
    return %c0_i32, %c0_i32_0 : i32, i32
  }
  func.func @transform_5(%arg0: i32) -> (i32, i32) {
    %c0_i32 = arith.constant 0 : i32
    %c0_i32_0 = arith.constant 0 : i32
    %c0_i32_1 = arith.constant 0 : i32
    return %c0_i32, %c0_i32_0 : i32, i32
  }
  func.func @transform_6(%arg0: i32) -> (i32, i32) {
    %c0_i32 = arith.constant 0 : i32
    %c0_i32_0 = arith.constant 0 : i32
    %c0_i32_1 = arith.constant 0 : i32
    return %c0_i32, %c0_i32_0 : i32, i32
  }
  func.func @transform_7(%arg0: i32) -> (i32, i32) {
    %c0_i32 = arith.constant 0 : i32
    %c0_i32_0 = arith.constant 0 : i32
    %c0_i32_1 = arith.constant 0 : i32
    return %c0_i32, %c0_i32_0 : i32, i32
  }
  func.func @transform_8(%arg0: i32) -> (i32, i32) {
    %c0_i32 = arith.constant 0 : i32
    %c0_i32_0 = arith.constant 0 : i32
    %c0_i32_1 = arith.constant 0 : i32
    return %c0_i32, %c0_i32_0 : i32, i32
  }
  func.func @transform_9(%arg0: i32) -> (i32, i32) {
    %c0_i32 = arith.constant 0 : i32
    %c0_i32_0 = arith.constant 0 : i32
    %c0_i32_1 = arith.constant 0 : i32
    return %c0_i32, %c0_i32_0 : i32, i32
  }
  func.func @transform_10(%arg0: i32) -> (i32, i32) {
    %c0_i32 = arith.constant 0 : i32
    %c0_i32_0 = arith.constant 0 : i32
    %c0_i32_1 = arith.constant 0 : i32
    return %c0_i32, %c0_i32_0 : i32, i32
  }
  func.func @transform_11(%arg0: i32) -> (i32, i32, i32) {
    %c0_i32 = arith.constant 0 : i32
    %c0_i32_0 = arith.constant 0 : i32
    %c0_i32_1 = arith.constant 0 : i32
    return %arg0, %c0_i32, %c0_i32_0 : i32, i32, i32
  }
}

</mosaic_0001>

<llo_original>
// kernel: tpu_custom_call.1
$region0: #{tpu_custom_call.1}
  #allocation0 [shape = 'u32[]', space=smem, size = 0x4, offset = 0x4, fixed_abs, tag = 'smem constant byte address 0x4 - core index']
  #allocation1 [shape = 'u32[144,128]{1,0:T(1,128)}', space=vmem, size = 0x12000, scoped, tag = 'internal scratch']
  %s0 = inlined_call_operand.vmem [shape: f32[2,4,256], index: 0, kind: input, shape index: {}]
  %s1 = inlined_call_operand.vmem [shape: bf16[256,16], index: 1, kind: input, shape index: {}]
  %s2 = inlined_call_operand.vmem [shape: bf16[256,16], index: 2, kind: input, shape index: {}]
  %s3 = inlined_call_operand.vmem [shape: bf16[16,256], index: 3, kind: input, shape index: {}]
  %s4 = inlined_call_operand.vmem [shape: bf16[16,256], index: 4, kind: input, shape index: {}]
  %s5 = inlined_call_operand.vmem [shape: bf16[8,4], index: 5, kind: input, shape index: {}]
  %s6 = inlined_call_operand.vmem [shape: f32[8,1], index: 6, kind: input, shape index: {}]
  %s7 = inlined_call_operand.vmem [shape: bf16[4,8], index: 7, kind: input, shape index: {}]
  %s8 = inlined_call_operand.vmem [shape: f32[4,1], index: 8, kind: input, shape index: {}]
  %s9 = inlined_call_operand.vmem [shape: bf16[4,8], index: 9, kind: input, shape index: {}]
  %s10 = inlined_call_operand.vmem [shape: f32[4,1], index: 10, kind: input, shape index: {}]
  %s11 = inlined_call_operand.hbm [shape: f32[2,4,256], index: 11, kind: output, shape index: {}]
  %s12 = sld [smem:[#allocation0]]
  $region77: #{tpu_custom_call.1} parent=0
    _
  %s14 = ssub.s32 1, %s12
  %s15 = scalar_select 0, %s14, %s12
  $region1: #{tpu_custom_call.1} parent=0
    #allocation2 [shape = 'u8[8192]{0}', space=vmem, size = 0x2000, scoped, tag = 'output window, operand 0']
    #allocation3 [shape = 's32[2]{0}', space=sflag, size = 0x8, scoped, tag = 'scoped memory for tpu_custom_call.1']
    %16 = vsyncpa [#allocation3], 0
    %s17 = scalar_lea.sflag [#allocation3], 1
    %18 = vsyncpa %s17, 0
    loop: start=0, step=1, limit=4
    $region2: #{tpu_custom_call.1} parent=1 // loop_pre_header
      _
    $region3: #{tpu_custom_call.1} parent=1 // loop_header
      %s20 = sphi 0, %s24
      %p21 = scmp.ge.s32.totalorder %s20, 4
      %s30 = sphi 0, %s32
      %s33 = sphi 0, %s30
      %s34 = sphi 0, %s33
      %s50 = sphi 0, %s34
      %s54 = sphi 0, %s54
      %s56 = sphi 0, %s54
      %s57 = sphi 0, %s56
      %s71 = sphi 0, %s57
      %s75 = sphi 0, %s75
      %s77 = sphi 0, %s75
      %s78 = sphi 0, %s77
      %s92 = sphi 0, %s78
      %s96 = sphi 0, %s96
      %s98 = sphi 0, %s96
      %s99 = sphi 0, %s98
      %s113 = sphi 0, %s99
      %s117 = sphi 0, %s117
      %s119 = sphi 0, %s117
      %s120 = sphi 0, %s119
      %s134 = sphi 0, %s120
      %s138 = sphi 0, %s138
      %s140 = sphi 0, %s138
      %s141 = sphi 0, %s140
      %s155 = sphi 0, %s141
      %s159 = sphi 0, %s159
      %s161 = sphi 0, %s159
      %s162 = sphi 0, %s161
      %s176 = sphi 0, %s162
      %s180 = sphi 0, %s180
      %s182 = sphi 0, %s180
      %s183 = sphi 0, %s182
      %s197 = sphi 0, %s183
      %s201 = sphi 0, %s201
      %s203 = sphi 0, %s201
      %s204 = sphi 0, %s203
      %s218 = sphi 0, %s204
      %s222 = sphi 0, %s222
      %s224 = sphi 0, %s222
      %s225 = sphi 0, %s224
      %s239 = sphi 0, %s225
      %s243 = sphi 0, %s243
      %s245 = sphi 0, %s243
      %s246 = sphi 0, %s245
      %s260 = sphi 0, %s246
      %s266 = sphi 0, %s268
      %s269 = sphi 0, %s266
      %s270 = sphi 0, %s269
      %s286 = sphi 0, %s270
    $region4: #{tpu_custom_call.1} parent=1 // loop_header_branch
      %23 = sbr.rel (%p21) target = $region8
    $region5: #{tpu_custom_call.1} parent=1 // loop_body
      %s25 = ssub.s32 %s20, 1
      %s26 = ssub.s32 %s20, 2
      %s27 = sadd.s32 %s20, 1
      %s28 = ssub.s32 %s20, %s27
      %p29 = scmp.eq.s32.totalorder %s28, 0
      %s31 = sadd.s32 %s30, 1
      %s32 = scalar_select %p29, %s30, %s31
      %p35 = pneg %p29
      %p36 = scmp.eq.s32.totalorder %s20, 1
      %p37 = por %p35, %p36
      %p38 = scmp.ne.s32.totalorder %s30, %s33
      %p39 = scmp.eq.s32.totalorder %s20, 0
      %p40 = por %p38, %p39
      %p41 = scmp.ne.s32.totalorder %s30, %s33
      %p42 = scmp.eq.s32.totalorder %s25, 1
      %p43 = por %p41, %p42
      %p44 = scmp.ne.s32.totalorder %s33, %s34
      %p45 = scmp.eq.s32.totalorder %s25, 0
      %p46 = por %p44, %p45
      %p47 = scmp.ne.s32.totalorder %s33, %s34
      %p48 = scmp.eq.s32.totalorder %s26, 1
      %p49 = por %p47, %p48
      %p51 = scmp.ne.s32.totalorder %s34, %s50
      %p52 = scmp.eq.s32.totalorder %s26, 0
      %p53 = por %p51, %p52
      %s55 = sadd.s32 %s54, 1
      %p58 = scmp.eq.s32.totalorder %s20, 1
      %p59 = scmp.ne.s32.totalorder %s54, %s56
      %p60 = scmp.eq.s32.totalorder %s20, 0
      %p61 = por %p59, %p60
      %p62 = scmp.ne.s32.totalorder %s54, %s56
      %p63 = scmp.eq.s32.totalorder %s25, 1
      %p64 = por %p62, %p63
      %p65 = scmp.ne.s32.totalorder %s56, %s57
      %p66 = scmp.eq.s32.totalorder %s25, 0
      %p67 = por %p65, %p66
      %p68 = scmp.ne.s32.totalorder %s56, %s57
      %p69 = scmp.eq.s32.totalorder %s26, 1
      %p70 = por %p68, %p69
      %p72 = scmp.ne.s32.totalorder %s57, %s71
      %p73 = scmp.eq.s32.totalorder %s26, 0
      %p74 = por %p72, %p73
      %s76 = sadd.s32 %s75, 1
      %p79 = scmp.eq.s32.totalorder %s20, 1
      %p80 = scmp.ne.s32.totalorder %s75, %s77
      %p81 = scmp.eq.s32.totalorder %s20, 0
      %p82 = por %p80, %p81
      %p83 = scmp.ne.s32.totalorder %s75, %s77
      %p84 = scmp.eq.s32.totalorder %s25, 1
      %p85 = por %p83, %p84
      %p86 = scmp.ne.s32.totalorder %s77, %s78
      %p87 = scmp.eq.s32.totalorder %s25, 0
      %p88 = por %p86, %p87
      %p89 = scmp.ne.s32.totalorder %s77, %s78
      %p90 = scmp.eq.s32.totalorder %s26, 1
      %p91 = por %p89, %p90
      %p93 = scmp.ne.s32.totalorder %s78, %s92
      %p94 = scmp.eq.s32.totalorder %s26, 0
      %p95 = por %p93, %p94
      %s97 = sadd.s32 %s96, 1
      %p100 = scmp.eq.s32.totalorder %s20, 1
      %p101 = scmp.ne.s32.totalorder %s96, %s98
      %p102 = scmp.eq.s32.totalorder %s20, 0
      %p103 = por %p101, %p102
      %p104 = scmp.ne.s32.totalorder %s96, %s98
      %p105 = scmp.eq.s32.totalorder %s25, 1
      %p106 = por %p104, %p105
      %p107 = scmp.ne.s32.totalorder %s98, %s99
      %p108 = scmp.eq.s32.totalorder %s25, 0
      %p109 = por %p107, %p108
      %p110 = scmp.ne.s32.totalorder %s98, %s99
      %p111 = scmp.eq.s32.totalorder %s26, 1
      %p112 = por %p110, %p111
      %p114 = scmp.ne.s32.totalorder %s99, %s113
      %p115 = scmp.eq.s32.totalorder %s26, 0
      %p116 = por %p114, %p115
      %s118 = sadd.s32 %s117, 1
      %p121 = scmp.eq.s32.totalorder %s20, 1
      %p122 = scmp.ne.s32.totalorder %s117, %s119
      %p123 = scmp.eq.s32.totalorder %s20, 0
      %p124 = por %p122, %p123
      %p125 = scmp.ne.s32.totalorder %s117, %s119
      %p126 = scmp.eq.s32.totalorder %s25, 1
      %p127 = por %p125, %p126
      %p128 = scmp.ne.s32.totalorder %s119, %s120
      %p129 = scmp.eq.s32.totalorder %s25, 0
      %p130 = por %p128, %p129
      %p131 = scmp.ne.s32.totalorder %s119, %s120
      %p132 = scmp.eq.s32.totalorder %s26, 1
      %p133 = por %p131, %p132
      %p135 = scmp.ne.s32.totalorder %s120, %s134
      %p136 = scmp.eq.s32.totalorder %s26, 0
      %p137 = por %p135, %p136
      %s139 = sadd.s32 %s138, 1
      %p142 = scmp.eq.s32.totalorder %s20, 1
      %p143 = scmp.ne.s32.totalorder %s138, %s140
      %p144 = scmp.eq.s32.totalorder %s20, 0
      %p145 = por %p143, %p144
      %p146 = scmp.ne.s32.totalorder %s138, %s140
      %p147 = scmp.eq.s32.totalorder %s25, 1
      %p148 = por %p146, %p147
      %p149 = scmp.ne.s32.totalorder %s140, %s141
      %p150 = scmp.eq.s32.totalorder %s25, 0
      %p151 = por %p149, %p150
      %p152 = scmp.ne.s32.totalorder %s140, %s141
      %p153 = scmp.eq.s32.totalorder %s26, 1
      %p154 = por %p152, %p153
      %p156 = scmp.ne.s32.totalorder %s141, %s155
      %p157 = scmp.eq.s32.totalorder %s26, 0
      %p158 = por %p156, %p157
      %s160 = sadd.s32 %s159, 1
      %p163 = scmp.eq.s32.totalorder %s20, 1
      %p164 = scmp.ne.s32.totalorder %s159, %s161
      %p165 = scmp.eq.s32.totalorder %s20, 0
      %p166 = por %p164, %p165
      %p167 = scmp.ne.s32.totalorder %s159, %s161
      %p168 = scmp.eq.s32.totalorder %s25, 1
      %p169 = por %p167, %p168
      %p170 = scmp.ne.s32.totalorder %s161, %s162
      %p171 = scmp.eq.s32.totalorder %s25, 0
      %p172 = por %p170, %p171
      %p173 = scmp.ne.s32.totalorder %s161, %s162
      %p174 = scmp.eq.s32.totalorder %s26, 1
      %p175 = por %p173, %p174
      %p177 = scmp.ne.s32.totalorder %s162, %s176
      %p178 = scmp.eq.s32.totalorder %s26, 0
      %p179 = por %p177, %p178
      %s181 = sadd.s32 %s180, 1
      %p184 = scmp.eq.s32.totalorder %s20, 1
      %p185 = scmp.ne.s32.totalorder %s180, %s182
      %p186 = scmp.eq.s32.totalorder %s20, 0
      %p187 = por %p185, %p186
      %p188 = scmp.ne.s32.totalorder %s180, %s182
      %p189 = scmp.eq.s32.totalorder %s25, 1
      %p190 = por %p188, %p189
      %p191 = scmp.ne.s32.totalorder %s182, %s183
      %p192 = scmp.eq.s32.totalorder %s25, 0
      %p193 = por %p191, %p192
      %p194 = scmp.ne.s32.totalorder %s182, %s183
      %p195 = scmp.eq.s32.totalorder %s26, 1
      %p196 = por %p194, %p195
      %p198 = scmp.ne.s32.totalorder %s183, %s197
      %p199 = scmp.eq.s32.totalorder %s26, 0
      %p200 = por %p198, %p199
      %s202 = sadd.s32 %s201, 1
      %p205 = scmp.eq.s32.totalorder %s20, 1
      %p206 = scmp.ne.s32.totalorder %s201, %s203
      %p207 = scmp.eq.s32.totalorder %s20, 0
      %p208 = por %p206, %p207
      %p209 = scmp.ne.s32.totalorder %s201, %s203
      %p210 = scmp.eq.s32.totalorder %s25, 1
      %p211 = por %p209, %p210
      %p212 = scmp.ne.s32.totalorder %s203, %s204
      %p213 = scmp.eq.s32.totalorder %s25, 0
      %p214 = por %p212, %p213
      %p215 = scmp.ne.s32.totalorder %s203, %s204
      %p216 = scmp.eq.s32.totalorder %s26, 1
      %p217 = por %p215, %p216
      %p219 = scmp.ne.s32.totalorder %s204, %s218
      %p220 = scmp.eq.s32.totalorder %s26, 0
      %p221 = por %p219, %p220
      %s223 = sadd.s32 %s222, 1
      %p226 = scmp.eq.s32.totalorder %s20, 1
      %p227 = scmp.ne.s32.totalorder %s222, %s224
      %p228 = scmp.eq.s32.totalorder %s20, 0
      %p229 = por %p227, %p228
      %p230 = scmp.ne.s32.totalorder %s222, %s224
      %p231 = scmp.eq.s32.totalorder %s25, 1
      %p232 = por %p230, %p231
      %p233 = scmp.ne.s32.totalorder %s224, %s225
      %p234 = scmp.eq.s32.totalorder %s25, 0
      %p235 = por %p233, %p234
      %p236 = scmp.ne.s32.totalorder %s224, %s225
      %p237 = scmp.eq.s32.totalorder %s26, 1
      %p238 = por %p236, %p237
      %p240 = scmp.ne.s32.totalorder %s225, %s239
      %p241 = scmp.eq.s32.totalorder %s26, 0
      %p242 = por %p240, %p241
      %s244 = sadd.s32 %s243, 1
      %p247 = scmp.eq.s32.totalorder %s20, 1
      %p248 = scmp.ne.s32.totalorder %s243, %s245
      %p249 = scmp.eq.s32.totalorder %s20, 0
      %p250 = por %p248, %p249
      %p251 = scmp.ne.s32.totalorder %s243, %s245
      %p252 = scmp.eq.s32.totalorder %s25, 1
      %p253 = por %p251, %p252
      %p254 = scmp.ne.s32.totalorder %s245, %s246
      %p255 = scmp.eq.s32.totalorder %s25, 0
      %p256 = por %p254, %p255
      %p257 = scmp.ne.s32.totalorder %s245, %s246
      %p258 = scmp.eq.s32.totalorder %s26, 1
      %p259 = por %p257, %p258
      %p261 = scmp.ne.s32.totalorder %s246, %s260
      %p262 = scmp.eq.s32.totalorder %s26, 0
      %p263 = por %p261, %p262
      %s264 = ssub.s32 %s20, %s27
      %p265 = scmp.eq.s32.totalorder %s264, 0
      %s267 = sadd.s32 %s266, 1
      %s268 = scalar_select %p265, %s266, %s267
      %p271 = pneg %p265
      %p272 = scmp.eq.s32.totalorder %s20, 1
      %p273 = por %p271, %p272
      %p274 = scmp.ne.s32.totalorder %s266, %s269
      %p275 = scmp.eq.s32.totalorder %s20, 0
      %p276 = por %p274, %p275
      %p277 = scmp.ne.s32.totalorder %s266, %s269
      %p278 = scmp.eq.s32.totalorder %s25, 1
      %p279 = por %p277, %p278
      %p280 = scmp.ne.s32.totalorder %s269, %s270
      %p281 = scmp.eq.s32.totalorder %s25, 0
      %p282 = por %p280, %p281
      %p283 = scmp.ne.s32.totalorder %s269, %s270
      %p284 = scmp.eq.s32.totalorder %s26, 1
      %p285 = por %p283, %p284
      %p287 = scmp.ne.s32.totalorder %s270, %s286
      %p288 = scmp.eq.s32.totalorder %s26, 0
      %p289 = por %p287, %p288
      %p290 = scmp.le.s32.totalorder 1, %s20
      %p291 = scmp.lt.s32.totalorder %s20, 3
      %p292 = pnand %p290, %p291
      %p293 = pneg %p292
      // Predicated region
      $region9: #{tpu_custom_call.1} parent=5 // pred_check
        _
      $region10: #{tpu_custom_call.1} parent=5 // pred_check_branch
        %295 = sbr.rel (%p292) target = $region12
      $region11: #{tpu_custom_call.1} parent=5 // pred_region
        %s296 = ssub.s32 %s20, 1
        // Predicated region
        $region13: #{tpu_custom_call.1} parent=11 // pred_check
          %p297 = pneg %p67
        $region14: #{tpu_custom_call.1} parent=11 // pred_check_branch
          %299 = sbr.rel (%p297) target = $region16
        $region15: #{tpu_custom_call.1} parent=11 // pred_region
          _
        $region16: #{tpu_custom_call.1} parent=11 // pred_fallthru
          _
        // Predicated region
        $region17: #{tpu_custom_call.1} parent=11 // pred_check
          %p300 = pneg %p88
        $region18: #{tpu_custom_call.1} parent=11 // pred_check_branch
          %302 = sbr.rel (%p300) target = $region20
        $region19: #{tpu_custom_call.1} parent=11 // pred_region
          _
        $region20: #{tpu_custom_call.1} parent=11 // pred_fallthru
          _
        // Predicated region
        $region21: #{tpu_custom_call.1} parent=11 // pred_check
          %p303 = pneg %p109
        $region22: #{tpu_custom_call.1} parent=11 // pred_check_branch
          %305 = sbr.rel (%p303) target = $region24
        $region23: #{tpu_custom_call.1} parent=11 // pred_region
          _
        $region24: #{tpu_custom_call.1} parent=11 // pred_fallthru
          _
        // Predicated region
        $region25: #{tpu_custom_call.1} parent=11 // pred_check
          %p306 = pneg %p130
        $region26: #{tpu_custom_call.1} parent=11 // pred_check_branch
          %308 = sbr.rel (%p306) target = $region28
        $region27: #{tpu_custom_call.1} parent=11 // pred_region
          _
        $region28: #{tpu_custom_call.1} parent=11 // pred_fallthru
          _
        // Predicated region
        $region29: #{tpu_custom_call.1} parent=11 // pred_check
          %p309 = pneg %p151
        $region30: #{tpu_custom_call.1} parent=11 // pred_check_branch
          %311 = sbr.rel (%p309) target = $region32
        $region31: #{tpu_custom_call.1} parent=11 // pred_region
          _
        $region32: #{tpu_custom_call.1} parent=11 // pred_fallthru
          _
        // Predicated region
        $region33: #{tpu_custom_call.1} parent=11 // pred_check
          %p312 = pneg %p172
        $region34: #{tpu_custom_call.1} parent=11 // pred_check_branch
          %314 = sbr.rel (%p312) target = $region36
        $region35: #{tpu_custom_call.1} parent=11 // pred_region
          _
        $region36: #{tpu_custom_call.1} parent=11 // pred_fallthru
          _
        // Predicated region
        $region37: #{tpu_custom_call.1} parent=11 // pred_check
          %p315 = pneg %p193
        $region38: #{tpu_custom_call.1} parent=11 // pred_check_branch
          %317 = sbr.rel (%p315) target = $region40
        $region39: #{tpu_custom_call.1} parent=11 // pred_region
          _
        $region40: #{tpu_custom_call.1} parent=11 // pred_fallthru
          _
        // Predicated region
        $region41: #{tpu_custom_call.1} parent=11 // pred_check
          %p318 = pneg %p214
        $region42: #{tpu_custom_call.1} parent=11 // pred_check_branch
          %320 = sbr.rel (%p318) target = $region44
        $region43: #{tpu_custom_call.1} parent=11 // pred_region
          _
        $region44: #{tpu_custom_call.1} parent=11 // pred_fallthru
          _
        // Predicated region
        $region45: #{tpu_custom_call.1} parent=11 // pred_check
          %p321 = pneg %p235
        $region46: #{tpu_custom_call.1} parent=11 // pred_check_branch
          %323 = sbr.rel (%p321) target = $region48
        $region47: #{tpu_custom_call.1} parent=11 // pred_region
          _
        $region48: #{tpu_custom_call.1} parent=11 // pred_fallthru
          _
        // Predicated region
        $region49: #{tpu_custom_call.1} parent=11 // pred_check
          %p324 = pneg %p256
        $region50: #{tpu_custom_call.1} parent=11 // pred_check_branch
          %326 = sbr.rel (%p324) target = $region52
        $region51: #{tpu_custom_call.1} parent=11 // pred_region
          _
        $region52: #{tpu_custom_call.1} parent=11 // pred_fallthru
          _
      $region12: #{tpu_custom_call.1} parent=5 // pred_fallthru
        _
      %p327 = scmp.lt.s32.totalorder %s20, 2
      // Predicated region
      $region53: #{tpu_custom_call.1} parent=5 // pred_check
        %p328 = pneg %p327
      $region54: #{tpu_custom_call.1} parent=5 // pred_check_branch
        %330 = sbr.rel (%p328) target = $region56
      $region55: #{tpu_custom_call.1} parent=5 // pred_region
        // Predicated region
        $region57: #{tpu_custom_call.1} parent=55 // pred_check
          %p331 = pneg %p40
        $region58: #{tpu_custom_call.1} parent=55 // pred_check_branch
          %333 = sbr.rel (%p331) target = $region60
        $region59: #{tpu_custom_call.1} parent=55 // pred_region
          %p334 = scmp.lt.s32.totalorder %s20, 1
          %s335 = scalar_select %p334, %s20, 1
          %s336 = smul.addr %s335, 2
          %s337 = smul.addr %s336, 4
          %s338 = scalar_lea.vmem %s0, %s337
        $region60: #{tpu_custom_call.1} parent=55 // pred_fallthru
          _
      $region56: #{tpu_custom_call.1} parent=5 // pred_fallthru
        _
      %p339 = scmp.le.s32.totalorder 1, %s20
      %p340 = scmp.lt.s32.totalorder %s20, 3
      %p341 = pnand %p339, %p340
      %p342 = pneg %p341
      // Predicated region
      $region61: #{tpu_custom_call.1} parent=5 // pred_check
        _
      $region62: #{tpu_custom_call.1} parent=5 // pred_check_branch
        %344 = sbr.rel (%p341) target = $region64
      $region63: #{tpu_custom_call.1} parent=5 // pred_region
        %s345 = ssub.s32 %s20, 1
        %p346 = scmp.lt.s32.totalorder %s25, 1
        %s347 = scalar_select %p346, %s25, 1
        %s348 = smul.addr %s347, 2
        %s349 = smul.addr %s348, 4
        %s350 = scalar_lea.vmem %s0, %s349
        %p351 = pneg %p46
        %p352 = pneg %p43
        %p353 = pneg %p67
        %p354 = pneg %p64
        %p355 = pneg %p88
        %p356 = pneg %p85
        %p357 = pneg %p109
        %p358 = pneg %p106
        %p359 = pneg %p130
        %p360 = pneg %p127
        %p361 = pneg %p151
        %p362 = pneg %p148
        %p363 = pneg %p172
        %p364 = pneg %p169
        %p365 = pneg %p193
        %p366 = pneg %p190
        %p367 = pneg %p214
        %p368 = pneg %p211
        %p369 = pneg %p235
        %p370 = pneg %p232
        %p371 = pneg %p256
        %p372 = pneg %p253
        %p373 = pneg %p282
        %p374 = pneg %p279
        %s375 = sand.u32 %s269, 1
        %s376 = scalar_lea.sflag [#allocation3], %s375
        %s377 = sand.u32 %s269, 1
        %s378 = smul.addr %s377, 8
        %s379 = scalar_lea.vmem [#allocation2], %s378
        %p380 = scmp.lt.s32.totalorder %s25, 1
        %s381 = scalar_select %p380, %s25, 1
        %s382 = smul.addr %s381, 2
        %s383 = smul.addr %s382, 4
        %s384 = scalar_lea.vmem %s0, %s383
        %v386 = vld [vmem:[%s5] sm:$0xf]
        %v387 = vld [vmem:[%s6] sm:$0xff]
        %v388 = vld [vmem:[%s7] sm:$0x3]
        %v389 = vld [vmem:[%s8] sm:$0xf]
        %v390 = vld [vmem:[%s9] sm:$0x3]
        %v391 = vld [vmem:[%s10] sm:$0xf]
        %v392 = vld [vmem:[%s1] sm:$0xf]
        %v393 = vld [vmem:[%s1 + $0x4] sm:$0xf]
        %v394 = vld [vmem:[%s1 + $0x8] sm:$0xf]
        %v395 = vld [vmem:[%s1 + $0xc] sm:$0xf]
        %v396 = vld [vmem:[%s1 + $0x10] sm:$0xf]
        %v397 = vld [vmem:[%s1 + $0x14] sm:$0xf]
        %v398 = vld [vmem:[%s1 + $0x18] sm:$0xf]
        %v399 = vld [vmem:[%s1 + $0x1c] sm:$0xf]
        %v400 = vld [vmem:[%s1 + $0x20] sm:$0xf]
        %v401 = vld [vmem:[%s1 + $0x24] sm:$0xf]
        %v402 = vld [vmem:[%s1 + $0x28] sm:$0xf]
        %v403 = vld [vmem:[%s1 + $0x2c] sm:$0xf]
        %v404 = vld [vmem:[%s1 + $0x30] sm:$0xf]
        %v405 = vld [vmem:[%s1 + $0x34] sm:$0xf]
        %v406 = vld [vmem:[%s1 + $0x38] sm:$0xf]
        %v407 = vld [vmem:[%s1 + $0x3c] sm:$0xf]
        %v408 = vld [vmem:[%s1 + $0x40] sm:$0xf]
        %v409 = vld [vmem:[%s1 + $0x44] sm:$0xf]
        %v410 = vld [vmem:[%s1 + $0x48] sm:$0xf]
        %v411 = vld [vmem:[%s1 + $0x4c] sm:$0xf]
        %v412 = vld [vmem:[%s1 + $0x50] sm:$0xf]
        %v413 = vld [vmem:[%s1 + $0x54] sm:$0xf]
        %v414 = vld [vmem:[%s1 + $0x58] sm:$0xf]
        %v415 = vld [vmem:[%s1 + $0x5c] sm:$0xf]
        %v416 = vld [vmem:[%s1 + $0x60] sm:$0xf]
        %v417 = vld [vmem:[%s1 + $0x64] sm:$0xf]
        %v418 = vld [vmem:[%s1 + $0x68] sm:$0xf]
        %v419 = vld [vmem:[%s1 + $0x6c] sm:$0xf]
        %v420 = vld [vmem:[%s1 + $0x70] sm:$0xf]
        %v421 = vld [vmem:[%s1 + $0x74] sm:$0xf]
        %v422 = vld [vmem:[%s1 + $0x78] sm:$0xf]
        %v423 = vld [vmem:[%s1 + $0x7c] sm:$0xf]
        %v424 = vld [vmem:[%s2] sm:$0xf]
        %v425 = vld [vmem:[%s2 + $0x4] sm:$0xf]
        %v426 = vld [vmem:[%s2 + $0x8] sm:$0xf]
        %v427 = vld [vmem:[%s2 + $0xc] sm:$0xf]
        %v428 = vld [vmem:[%s2 + $0x10] sm:$0xf]
        %v429 = vld [vmem:[%s2 + $0x14] sm:$0xf]
        %v430 = vld [vmem:[%s2 + $0x18] sm:$0xf]
        %v431 = vld [vmem:[%s2 + $0x1c] sm:$0xf]
        %v432 = vld [vmem:[%s2 + $0x20] sm:$0xf]
        %v433 = vld [vmem:[%s2 + $0x24] sm:$0xf]
        %v434 = vld [vmem:[%s2 + $0x28] sm:$0xf]
        %v435 = vld [vmem:[%s2 + $0x2c] sm:$0xf]
        %v436 = vld [vmem:[%s2 + $0x30] sm:$0xf]
        %v437 = vld [vmem:[%s2 + $0x34] sm:$0xf]
        %v438 = vld [vmem:[%s2 + $0x38] sm:$0xf]
        %v439 = vld [vmem:[%s2 + $0x3c] sm:$0xf]
        %v440 = vld [vmem:[%s2 + $0x40] sm:$0xf]
        %v441 = vld [vmem:[%s2 + $0x44] sm:$0xf]
        %v442 = vld [vmem:[%s2 + $0x48] sm:$0xf]
        %v443 = vld [vmem:[%s2 + $0x4c] sm:$0xf]
        %v444 = vld [vmem:[%s2 + $0x50] sm:$0xf]
        %v445 = vld [vmem:[%s2 + $0x54] sm:$0xf]
        %v446 = vld [vmem:[%s2 + $0x58] sm:$0xf]
        %v447 = vld [vmem:[%s2 + $0x5c] sm:$0xf]
        %v448 = vld [vmem:[%s2 + $0x60] sm:$0xf]
        %v449 = vld [vmem:[%s2 + $0x64] sm:$0xf]
        %v450 = vld [vmem:[%s2 + $0x68] sm:$0xf]
        %v451 = vld [vmem:[%s2 + $0x6c] sm:$0xf]
        %v452 = vld [vmem:[%s2 + $0x70] sm:$0xf]
        %v453 = vld [vmem:[%s2 + $0x74] sm:$0xf]
        %v454 = vld [vmem:[%s2 + $0x78] sm:$0xf]
        %v455 = vld [vmem:[%s2 + $0x7c] sm:$0xf]
        %v456 = vld [vmem:[%s3] sm:$0xff]
        %v457 = vld [vmem:[%s3 + $0x8] sm:$0xff]
        %v458 = vld [vmem:[%s4] sm:$0xff]
        %v459 = vld [vmem:[%s4 + $0x8] sm:$0xff]
        %v460 = vld [vmem:[%s384] sm:$0xff]
        %v462 = vcombine.high %v460, %v460
        %v464 = vpack.c.bf16 %v460, %v460
        %v465 = vpack.c.bf16 %v462, %v462
        %vm466 = vcmask 31744
        %v468 = vsel %vm466, %v386, 0
        %vm470 = vcmask 1041408
        %v472 = vsel %vm470, %v464, 0
        %v475 = vsel %vm470, %v465, 0
        %477 = vmatprep.subr.bf16.mxu0 0
        %478 = vmatpush1.bf16.msra.mxu0 0
        %479 = vmatprep.subr.bf16.mxu0 0
        %480 = vmatpush1.bf16.msra.mxu0 0
        %481 = vmatprep.subr.bf16.mxu0 0
        %482 = vmatpush1.bf16.msra.mxu0 0
        %483 = vmatprep.subr.bf16.mxu0 0
        %484 = vmatpush1.bf16.msra.mxu0 0
        %485 = vmatprep.subr.bf16.mxu0 0
        %486 = vmatpush1.bf16.msra.mxu0 0
        %487 = vmatprep.subr.bf16.mxu0 0
        %488 = vmatpush1.bf16.msra.mxu0 0
        %489 = vmatprep.subr.bf16.mxu0 0
        %490 = vmatpush1.bf16.msra.mxu0 0
        %491 = vmatprep.subr.bf16.mxu0 %v475
        %492 = vmatpush1.bf16.msra.mxu0 %v472
        %493 = vmatprep.subr.bf16.mxu0 0
        %494 = vmatpush2.bf16.msra.mxu0 0
        %495 = vmatprep.subr.bf16.mxu0 0
        %496 = vmatpush2.bf16.msra.mxu0 0
        %497 = vmatprep.subr.bf16.mxu0 0
        %498 = vmatpush2.bf16.msra.mxu0 0
        %499 = vmatprep.subr.bf16.mxu0 0
        %500 = vmatpush2.bf16.msra.mxu0 0
        %501 = vmatprep.subr.bf16.mxu0 0
        %502 = vmatpush2.bf16.msra.mxu0 0
        %503 = vmatprep.subr.bf16.mxu0 0
        %504 = vmatpush2.bf16.msra.mxu0 0
        %505 = vmatprep.subr.bf16.mxu0 0
        %506 = vmatpush2.bf16.msra.mxu0 0
        %507 = vmatprep.subr.bf16.mxu0 0
        %508 = vmatpush2.bf16.msra.mxu0 0
        %509 = vmatprep.mubr.bf16.mxu0 0
        %510 = vmatmul.mubr.bf16.gmra.mxu0 %v468
        %v511 = vpop.f32.mrf.mxu0
        %v512 = vadd.f32 0.0, %v511
        %v513 = vpop.f32.mrf.mxu0
        %v514 = vadd.f32 0.0, %v513
        %v515 = vpop.f32.mrf.mxu0
        %v516 = vpop.f32.mrf.mxu0
        %517 = vdwg.mxu0
        %v518 = vpack.c.bf16 %v512, %v512
        %v519 = vpack.c.bf16 %v514, %v514
        %v552 = vunpack.c.l.b16 %v392
        %v553 = vunpack.c.l.b16 %v393
        %v554 = vunpack.c.l.b16 %v394
        %v555 = vunpack.c.l.b16 %v395
        %v556 = vunpack.c.l.b16 %v396
        %v557 = vunpack.c.l.b16 %v397
        %v558 = vunpack.c.l.b16 %v398
        %v559 = vunpack.c.l.b16 %v399
        %v560 = vunpack.c.l.b16 %v400
        %v561 = vunpack.c.l.b16 %v401
        %v562 = vunpack.c.l.b16 %v402
        %v563 = vunpack.c.l.b16 %v403
        %v564 = vunpack.c.l.b16 %v404
        %v565 = vunpack.c.l.b16 %v405
        %v566 = vunpack.c.l.b16 %v406
        %v567 = vunpack.c.l.b16 %v407
        %v568 = vunpack.c.l.b16 %v408
        %v569 = vunpack.c.l.b16 %v409
        %v570 = vunpack.c.l.b16 %v410
        %v571 = vunpack.c.l.b16 %v411
        %v572 = vunpack.c.l.b16 %v412
        %v573 = vunpack.c.l.b16 %v413
        %v574 = vunpack.c.l.b16 %v414
        %v575 = vunpack.c.l.b16 %v415
        %v576 = vunpack.c.l.b16 %v416
        %v577 = vunpack.c.l.b16 %v417
        %v578 = vunpack.c.l.b16 %v418
        %v579 = vunpack.c.l.b16 %v419
        %v580 = vunpack.c.l.b16 %v420
        %v581 = vunpack.c.l.b16 %v421
        %v582 = vunpack.c.l.b16 %v422
        %v583 = vunpack.c.l.b16 %v423
        %v584 = vpack.c.b16 %v553, %v552
        %v585 = vpack.c.b16 %v555, %v554
        %v586 = vpack.c.b16 %v557, %v556
        %v587 = vpack.c.b16 %v559, %v558
        %v588 = vpack.c.b16 %v561, %v560
        %v589 = vpack.c.b16 %v563, %v562
        %v590 = vpack.c.b16 %v565, %v564
        %v591 = vpack.c.b16 %v567, %v566
        %v592 = vpack.c.b16 %v569, %v568
        %v593 = vpack.c.b16 %v571, %v570
        %v594 = vpack.c.b16 %v573, %v572
        %v595 = vpack.c.b16 %v575, %v574
        %v596 = vpack.c.b16 %v577, %v576
        %v597 = vpack.c.b16 %v579, %v578
        %v598 = vpack.c.b16 %v581, %v580
        %v599 = vpack.c.b16 %v583, %v582
        %616 = vmatprep.subr.bf16.mxu0 0
        %617 = vmatpush1.bf16.msra.mxu0 %v591
        %618 = vmatprep.subr.bf16.mxu0 0
        %619 = vmatpush1.bf16.msra.mxu0 %v590
        %620 = vmatprep.subr.bf16.mxu0 0
        %621 = vmatpush1.bf16.msra.mxu0 %v589
        %622 = vmatprep.subr.bf16.mxu0 0
        %623 = vmatpush1.bf16.msra.mxu0 %v588
        %624 = vmatprep.subr.bf16.mxu0 0
        %625 = vmatpush1.bf16.msra.mxu0 %v587
        %626 = vmatprep.subr.bf16.mxu0 0
        %627 = vmatpush1.bf16.msra.mxu0 %v586
        %628 = vmatprep.subr.bf16.mxu0 0
        %629 = vmatpush1.bf16.msra.mxu0 %v585
        %630 = vmatprep.subr.bf16.mxu0 0
        %631 = vmatpush1.bf16.msra.mxu0 %v584
        %632 = vmatprep.subr.bf16.mxu0 0
        %633 = vmatpush2.bf16.msra.mxu0 %v599
        %634 = vmatprep.subr.bf16.mxu0 0
        %635 = vmatpush2.bf16.msra.mxu0 %v598
        %636 = vmatprep.subr.bf16.mxu0 0
        %637 = vmatpush2.bf16.msra.mxu0 %v597
        %638 = vmatprep.subr.bf16.mxu0 0
        %639 = vmatpush2.bf16.msra.mxu0 %v596
        %640 = vmatprep.subr.bf16.mxu0 0
        %641 = vmatpush2.bf16.msra.mxu0 %v595
        %642 = vmatprep.subr.bf16.mxu0 0
        %643 = vmatpush2.bf16.msra.mxu0 %v594
        %644 = vmatprep.subr.bf16.mxu0 0
        %645 = vmatpush2.bf16.msra.mxu0 %v593
        %646 = vmatprep.subr.bf16.mxu0 0
        %647 = vmatpush2.bf16.msra.mxu0 %v592
        %648 = vmatprep.mubr.bf16.mxu0 %v519
        %649 = vmatmul.mubr.bf16.gmra.mxu0 %v518
        %v650 = vpop.f32.mrf.mxu0
        %v651 = vadd.f32 0.0, %v650
        %v652 = vpop.f32.mrf.mxu0
        %v653 = vpop.f32.mrf.mxu0
        %v654 = vpop.f32.mrf.mxu0
        %655 = vdwg.mxu0
        %v656 = vmul.f32 %v651, 0.0625
        %658 = vset.pattern.permute.xlu0 0
        %659 = vperm.xlu0 %658, %v387
        %v660 = vpop.permute.xlu0 %659
        %v662 = vadd.f32 %v656, %v660
        %v695 = vunpack.c.l.b16 %v424
        %v696 = vunpack.c.l.b16 %v425
        %v697 = vunpack.c.l.b16 %v426
        %v698 = vunpack.c.l.b16 %v427
        %v699 = vunpack.c.l.b16 %v428
        %v700 = vunpack.c.l.b16 %v429
        %v701 = vunpack.c.l.b16 %v430
        %v702 = vunpack.c.l.b16 %v431
        %v703 = vunpack.c.l.b16 %v432
        %v704 = vunpack.c.l.b16 %v433
        %v705 = vunpack.c.l.b16 %v434
        %v706 = vunpack.c.l.b16 %v435
        %v707 = vunpack.c.l.b16 %v436
        %v708 = vunpack.c.l.b16 %v437
        %v709 = vunpack.c.l.b16 %v438
        %v710 = vunpack.c.l.b16 %v439
        %v711 = vunpack.c.l.b16 %v440
        %v712 = vunpack.c.l.b16 %v441
        %v713 = vunpack.c.l.b16 %v442
        %v714 = vunpack.c.l.b16 %v443
        %v715 = vunpack.c.l.b16 %v444
        %v716 = vunpack.c.l.b16 %v445
        %v717 = vunpack.c.l.b16 %v446
        %v718 = vunpack.c.l.b16 %v447
        %v719 = vunpack.c.l.b16 %v448
        %v720 = vunpack.c.l.b16 %v449
        %v721 = vunpack.c.l.b16 %v450
        %v722 = vunpack.c.l.b16 %v451
        %v723 = vunpack.c.l.b16 %v452
        %v724 = vunpack.c.l.b16 %v453
        %v725 = vunpack.c.l.b16 %v454
        %v726 = vunpack.c.l.b16 %v455
        %v727 = vpack.c.b16 %v696, %v695
        %v728 = vpack.c.b16 %v698, %v697
        %v729 = vpack.c.b16 %v700, %v699
        %v730 = vpack.c.b16 %v702, %v701
        %v731 = vpack.c.b16 %v704, %v703
        %v732 = vpack.c.b16 %v706, %v705
        %v733 = vpack.c.b16 %v708, %v707
        %v734 = vpack.c.b16 %v710, %v709
        %v735 = vpack.c.b16 %v712, %v711
        %v736 = vpack.c.b16 %v714, %v713
        %v737 = vpack.c.b16 %v716, %v715
        %v738 = vpack.c.b16 %v718, %v717
        %v739 = vpack.c.b16 %v720, %v719
        %v740 = vpack.c.b16 %v722, %v721
        %v741 = vpack.c.b16 %v724, %v723
        %v742 = vpack.c.b16 %v726, %v725
        %759 = vmatprep.subr.bf16.mxu0 0
        %760 = vmatpush1.bf16.msra.mxu0 %v734
        %761 = vmatprep.subr.bf16.mxu0 0
        %762 = vmatpush1.bf16.msra.mxu0 %v733
        %763 = vmatprep.subr.bf16.mxu0 0
        %764 = vmatpush1.bf16.msra.mxu0 %v732
        %765 = vmatprep.subr.bf16.mxu0 0
        %766 = vmatpush1.bf16.msra.mxu0 %v731
        %767 = vmatprep.subr.bf16.mxu0 0
        %768 = vmatpush1.bf16.msra.mxu0 %v730
        %769 = vmatprep.subr.bf16.mxu0 0
        %770 = vmatpush1.bf16.msra.mxu0 %v729
        %771 = vmatprep.subr.bf16.mxu0 0
        %772 = vmatpush1.bf16.msra.mxu0 %v728
        %773 = vmatprep.subr.bf16.mxu0 0
        %774 = vmatpush1.bf16.msra.mxu0 %v727
        %775 = vmatprep.subr.bf16.mxu0 0
        %776 = vmatpush2.bf16.msra.mxu0 %v742
        %777 = vmatprep.subr.bf16.mxu0 0
        %778 = vmatpush2.bf16.msra.mxu0 %v741
        %779 = vmatprep.subr.bf16.mxu0 0
        %780 = vmatpush2.bf16.msra.mxu0 %v740
        %781 = vmatprep.subr.bf16.mxu0 0
        %782 = vmatpush2.bf16.msra.mxu0 %v739
        %783 = vmatprep.subr.bf16.mxu0 0
        %784 = vmatpush2.bf16.msra.mxu0 %v738
        %785 = vmatprep.subr.bf16.mxu0 0
        %786 = vmatpush2.bf16.msra.mxu0 %v737
        %787 = vmatprep.subr.bf16.mxu0 0
        %788 = vmatpush2.bf16.msra.mxu0 %v736
        %789 = vmatprep.subr.bf16.mxu0 0
        %790 = vmatpush2.bf16.msra.mxu0 %v735
        %791 = vmatprep.mubr.bf16.mxu0 %v519
        %792 = vmatmul.mubr.bf16.gmra.mxu0 %v518
        %v793 = vpop.f32.mrf.mxu0
        %v794 = vadd.f32 0.0, %v793
        %v795 = vpop.f32.mrf.mxu0
        %v796 = vpop.f32.mrf.mxu0
        %v797 = vpop.f32.mrf.mxu0
        %798 = vdwg.mxu0
        %v799 = vmul.f32 %v794, 0.0625
        %v800 = vadd.f32 %v799, %v660
        %v801 = vadd.f32 %v662, 3.0
        %v802 = vmax.f32 %v801, 0.0
        %v803 = vmin.f32 %v802, 6.0
        %v804 = vmul.f32 %v803, 0.16666667
        %v805 = vmul.f32 %v662, %v804
        %v806 = vadd.f32 %v800, 3.0
        %v807 = vmax.f32 %v806, 0.0
        %v808 = vmin.f32 %v807, 6.0
        %v809 = vmul.f32 %v808, 0.16666667
        %v810 = vmul.f32 %v800, %v809
        %v811 = vpack.c.bf16 %v805, %v805
        %813 = vset.pattern.permute.xlu0 0
        %814 = vperm.xlu0 %813, %v389
        %v815 = vpop.permute.xlu0 %814
        %vm817 = vcmask 64512
        %v819 = vsel %vm817, %v388, 0
        %vm821 = vcmask 1043456
        %v823 = vsel %vm821, %v811, 0
        %825 = vmatprep.subr.bf16.mxu0 0
        %826 = vmatpush1.bf16.msra.mxu0 0
        %827 = vmatprep.subr.bf16.mxu0 0
        %828 = vmatpush1.bf16.msra.mxu0 0
        %829 = vmatprep.subr.bf16.mxu0 0
        %830 = vmatpush1.bf16.msra.mxu0 0
        %831 = vmatprep.subr.bf16.mxu0 0
        %832 = vmatpush1.bf16.msra.mxu0 0
        %833 = vmatprep.subr.bf16.mxu0 0
        %834 = vmatpush1.bf16.msra.mxu0 0
        %835 = vmatprep.subr.bf16.mxu0 0
        %836 = vmatpush1.bf16.msra.mxu0 0
        %837 = vmatprep.subr.bf16.mxu0 0
        %838 = vmatpush1.bf16.msra.mxu0 0
        %839 = vmatprep.subr.bf16.mxu0 0
        %840 = vmatpush1.bf16.msra.mxu0 %v823
        %841 = vmatprep.subr.bf16.mxu0 0
        %842 = vmatpush2.bf16.msra.mxu0 0
        %843 = vmatprep.subr.bf16.mxu0 0
        %844 = vmatpush2.bf16.msra.mxu0 0
        %845 = vmatprep.subr.bf16.mxu0 0
        %846 = vmatpush2.bf16.msra.mxu0 0
        %847 = vmatprep.subr.bf16.mxu0 0
        %848 = vmatpush2.bf16.msra.mxu0 0
        %849 = vmatprep.subr.bf16.mxu0 0
        %850 = vmatpush2.bf16.msra.mxu0 0
        %851 = vmatprep.subr.bf16.mxu0 0
        %852 = vmatpush2.bf16.msra.mxu0 0
        %853 = vmatprep.subr.bf16.mxu0 0
        %854 = vmatpush2.bf16.msra.mxu0 0
        %855 = vmatprep.subr.bf16.mxu0 0
        %856 = vmatpush2.bf16.msra.mxu0 0
        %857 = vmatprep.mubr.bf16.mxu0 0
        %858 = vmatmul.mubr.bf16.gmra.mxu0 %v819
        %v859 = vpop.f32.mrf.mxu0
        %v860 = vadd.f32 %v815, %v859
        %v861 = vpop.f32.mrf.mxu0
        %v862 = vpop.f32.mrf.mxu0
        %v863 = vpop.f32.mrf.mxu0
        %864 = vdwg.mxu0
        %v865 = vxor.u32 %v860, 2147483648
        %v866 = vmul.f32 %v865, 1.442695
        %v867 = vpow.pop %v866
        %v868 = vadd.f32 %v867, 1.0
        %v869 = vrcp.pop %v868
        %v870 = vmul.f32 1.0, %v869
        %v871 = vpack.c.bf16 %v810, %v810
        %873 = vset.pattern.permute.xlu0 0
        %874 = vperm.xlu0 %873, %v391
        %v875 = vpop.permute.xlu0 %874
        %v878 = vsel %vm817, %v390, 0
        %v881 = vsel %vm821, %v871, 0
        %883 = vmatprep.subr.bf16.mxu0 0
        %884 = vmatpush1.bf16.msra.mxu0 0
        %885 = vmatprep.subr.bf16.mxu0 0
        %886 = vmatpush1.bf16.msra.mxu0 0
        %887 = vmatprep.subr.bf16.mxu0 0
        %888 = vmatpush1.bf16.msra.mxu0 0
        %889 = vmatprep.subr.bf16.mxu0 0
        %890 = vmatpush1.bf16.msra.mxu0 0
        %891 = vmatprep.subr.bf16.mxu0 0
        %892 = vmatpush1.bf16.msra.mxu0 0
        %893 = vmatprep.subr.bf16.mxu0 0
        %894 = vmatpush1.bf16.msra.mxu0 0
        %895 = vmatprep.subr.bf16.mxu0 0
        %896 = vmatpush1.bf16.msra.mxu0 0
        %897 = vmatprep.subr.bf16.mxu0 0
        %898 = vmatpush1.bf16.msra.mxu0 %v881
        %899 = vmatprep.subr.bf16.mxu0 0
        %900 = vmatpush2.bf16.msra.mxu0 0
        %901 = vmatprep.subr.bf16.mxu0 0
        %902 = vmatpush2.bf16.msra.mxu0 0
        %903 = vmatprep.subr.bf16.mxu0 0
        %904 = vmatpush2.bf16.msra.mxu0 0
        %905 = vmatprep.subr.bf16.mxu0 0
        %906 = vmatpush2.bf16.msra.mxu0 0
        %907 = vmatprep.subr.bf16.mxu0 0
        %908 = vmatpush2.bf16.msra.mxu0 0
        %909 = vmatprep.subr.bf16.mxu0 0
        %910 = vmatpush2.bf16.msra.mxu0 0
        %911 = vmatprep.subr.bf16.mxu0 0
        %912 = vmatpush2.bf16.msra.mxu0 0
        %913 = vmatprep.subr.bf16.mxu0 0
        %914 = vmatpush2.bf16.msra.mxu0 0
        %915 = vmatprep.mubr.bf16.mxu0 0
        %916 = vmatmul.mubr.bf16.gmra.mxu0 %v878
        %v917 = vpop.f32.mrf.mxu0
        %v918 = vadd.f32 %v875, %v917
        %v919 = vpop.f32.mrf.mxu0
        %v920 = vpop.f32.mrf.mxu0
        %v921 = vpop.f32.mrf.mxu0
        %922 = vdwg.mxu0
        %v923 = vxor.u32 %v918, 2147483648
        %v924 = vmul.f32 %v923, 1.442695
        %v925 = vpow.pop %v924
        %v926 = vadd.f32 %v925, 1.0
        %v927 = vrcp.pop %v926
        %v928 = vmul.f32 1.0, %v927
        %v929 = vpack.c.bf16 %v870, %v870
        %v932 = vunpack.c.l.b16 %v456
        %v933 = vunpack.c.h.b16 %v456
        %v934 = vunpack.c.l.b16 %v457
        %v935 = vunpack.c.h.b16 %v457
        %v936 = vpack.c.b16 %v934, %v932
        %v937 = vpack.c.b16 %v935, %v933
        %vm940 = vcmask 130048
        %v942 = vsel %vm940, %v929, 0
        %944 = vmatprep.subr.bf16.mxu0 0
        %945 = vmatpush1.bf16.msra.mxu0 0
        %946 = vmatprep.subr.bf16.mxu0 0
        %947 = vmatpush1.bf16.msra.mxu0 0
        %948 = vmatprep.subr.bf16.mxu0 0
        %949 = vmatpush1.bf16.msra.mxu0 0
        %950 = vmatprep.subr.bf16.mxu0 0
        %951 = vmatpush1.bf16.msra.mxu0 0
        %952 = vmatprep.subr.bf16.mxu0 0
        %953 = vmatpush1.bf16.msra.mxu0 0
        %954 = vmatprep.subr.bf16.mxu0 0
        %955 = vmatpush1.bf16.msra.mxu0 0
        %956 = vmatprep.subr.bf16.mxu0 0
        %957 = vmatpush1.bf16.msra.mxu0 0
        %958 = vmatprep.subr.bf16.mxu0 %v937
        %959 = vmatpush1.bf16.msra.mxu0 %v936
        %960 = vmatprep.subr.bf16.mxu0 0
        %961 = vmatpush2.bf16.msra.mxu0 0
        %962 = vmatprep.subr.bf16.mxu0 0
        %963 = vmatpush2.bf16.msra.mxu0 0
        %964 = vmatprep.subr.bf16.mxu0 0
        %965 = vmatpush2.bf16.msra.mxu0 0
        %966 = vmatprep.subr.bf16.mxu0 0
        %967 = vmatpush2.bf16.msra.mxu0 0
        %968 = vmatprep.subr.bf16.mxu0 0
        %969 = vmatpush2.bf16.msra.mxu0 0
        %970 = vmatprep.subr.bf16.mxu0 0
        %971 = vmatpush2.bf16.msra.mxu0 0
        %972 = vmatprep.subr.bf16.mxu0 0
        %973 = vmatpush2.bf16.msra.mxu0 0
        %974 = vmatprep.subr.bf16.mxu0 0
        %975 = vmatpush2.bf16.msra.mxu0 0
        %976 = vmatprep.mubr.bf16.mxu0 0
        %977 = vmatmul.mubr.bf16.gmra.mxu0 %v942
        %v978 = vpop.f32.mrf.mxu0
        %v979 = vadd.f32 0.0, %v978
        %v980 = vpop.f32.mrf.mxu0
        %v981 = vadd.f32 0.0, %v980
        %v982 = vpop.f32.mrf.mxu0
        %v983 = vpop.f32.mrf.mxu0
        %984 = vdwg.mxu0
        %v985 = vpack.c.bf16 %v928, %v928
        %v988 = vunpack.c.l.b16 %v458
        %v989 = vunpack.c.h.b16 %v458
        %v990 = vunpack.c.l.b16 %v459
        %v991 = vunpack.c.h.b16 %v459
        %v992 = vpack.c.b16 %v990, %v988
        %v993 = vpack.c.b16 %v991, %v989
        %v997 = vsel %vm940, %v985, 0
        %999 = vmatprep.subr.bf16.mxu0 0
        %1000 = vmatpush1.bf16.msra.mxu0 0
        %1001 = vmatprep.subr.bf16.mxu0 0
        %1002 = vmatpush1.bf16.msra.mxu0 0
        %1003 = vmatprep.subr.bf16.mxu0 0
        %1004 = vmatpush1.bf16.msra.mxu0 0
        %1005 = vmatprep.subr.bf16.mxu0 0
        %1006 = vmatpush1.bf16.msra.mxu0 0
        %1007 = vmatprep.subr.bf16.mxu0 0
        %1008 = vmatpush1.bf16.msra.mxu0 0
        %1009 = vmatprep.subr.bf16.mxu0 0
        %1010 = vmatpush1.bf16.msra.mxu0 0
        %1011 = vmatprep.subr.bf16.mxu0 0
        %1012 = vmatpush1.bf16.msra.mxu0 0
        %1013 = vmatprep.subr.bf16.mxu0 %v993
        %1014 = vmatpush1.bf16.msra.mxu0 %v992
        %1015 = vmatprep.subr.bf16.mxu0 0
        %1016 = vmatpush2.bf16.msra.mxu0 0
        %1017 = vmatprep.subr.bf16.mxu0 0
        %1018 = vmatpush2.bf16.msra.mxu0 0
        %1019 = vmatprep.subr.bf16.mxu0 0
        %1020 = vmatpush2.bf16.msra.mxu0 0
        %1021 = vmatprep.subr.bf16.mxu0 0
        %1022 = vmatpush2.bf16.msra.mxu0 0
        %1023 = vmatprep.subr.bf16.mxu0 0
        %1024 = vmatpush2.bf16.msra.mxu0 0
        %1025 = vmatprep.subr.bf16.mxu0 0
        %1026 = vmatpush2.bf16.msra.mxu0 0
        %1027 = vmatprep.subr.bf16.mxu0 0
        %1028 = vmatpush2.bf16.msra.mxu0 0
        %1029 = vmatprep.subr.bf16.mxu0 0
        %1030 = vmatpush2.bf16.msra.mxu0 0
        %1031 = vmatprep.mubr.bf16.mxu0 0
        %1032 = vmatmul.mubr.bf16.gmra.mxu0 %v997
        %v1033 = vpop.f32.mrf.mxu0
        %v1034 = vadd.f32 0.0, %v1033
        %v1035 = vpop.f32.mrf.mxu0
        %v1036 = vadd.f32 0.0, %v1035
        %v1037 = vpop.f32.mrf.mxu0
        %v1038 = vpop.f32.mrf.mxu0
        %1039 = vdwg.mxu0
        %v1042 = vcombine.low %v979, %v981
        %v1044 = vmul.f32 %v460, %v1042
        %v1047 = vcombine.low %v1034, %v1036
        %v1049 = vmul.f32 %v1044, %v1047
        %1050 = vst [vmem:[%s379] sm:$0xff] %v1049
        %s1051 = sand.u32 %s269, 1
        %s1052 = scalar_lea.sflag [#allocation3], %s1051
        %s1053 = sand.u32 %s269, 1
        %s1054 = smul.addr %s1053, 8
        %s1055 = scalar_lea.vmem [#allocation2], %s1054
        // Predicated region
        $region65: #{tpu_custom_call.1} parent=63 // pred_check
          %p1056 = pneg %p279
        $region66: #{tpu_custom_call.1} parent=63 // pred_check_branch
          %1058 = sbr.rel (%p1056) target = $region68
        $region67: #{tpu_custom_call.1} parent=63 // pred_region
          %s1060 = ssub.s32 128, 128
          %1061 = vsyncadd %s1052, %s1060
          %s1062 = smul.addr %s25, 2
          %s1063 = smul.addr %s1062, 64
          %s1064 = scalar_lea.hbm %s11, %s1063
          %s1066 = sshll.u32 %s1055, 4
          %s1067 = int_to_ptr.vmem [resolvable:$true] %s1066
          %1069 = dma.vmem_to_hbm [thread:$0]  %s1067, 128, %s1064, %s1052
        $region68: #{tpu_custom_call.1} parent=63 // pred_fallthru
          _
      $region64: #{tpu_custom_call.1} parent=5 // pred_fallthru
        _
      %p1070 = scmp.le.s32.totalorder 2, %s20
      // Predicated region
      $region69: #{tpu_custom_call.1} parent=5 // pred_check
        %p1071 = pneg %p1070
      $region70: #{tpu_custom_call.1} parent=5 // pred_check_branch
        %1073 = sbr.rel (%p1071) target = $region72
      $region71: #{tpu_custom_call.1} parent=5 // pred_region
        %s1074 = ssub.s32 %s20, 2
        // Predicated region
        $region73: #{tpu_custom_call.1} parent=71 // pred_check
          %p1075 = pneg %p285
        $region74: #{tpu_custom_call.1} parent=71 // pred_check_branch
          %1077 = sbr.rel (%p1075) target = $region76
        $region75: #{tpu_custom_call.1} parent=71 // pred_region
          %s1078 = sand.u32 %s270, 1
          %s1079 = scalar_lea.sflag [#allocation3], %s1078
          %s1080 = sand.u32 %s270, 1
          %s1081 = smul.addr %s1080, 8
          %s1082 = scalar_lea.vmem [#allocation2], %s1081
          %1083 = dma.done %s1079, 128
        $region76: #{tpu_custom_call.1} parent=71 // pred_fallthru
          _
      $region72: #{tpu_custom_call.1} parent=5 // pred_fallthru
        _
    $region6: #{tpu_custom_call.1} parent=1 // loop_footer
      %s24 = sadd.s32 1, %s20
    $region7: #{tpu_custom_call.1} parent=1 // loop_footer_branch
      %19 = sbr.rel target = $region3
    $region8: #{tpu_custom_call.1} parent=1 // loop_exit
      _
    %1084 = vsyncpa [#allocation3], 1
    %s1085 = scalar_lea.sflag [#allocation3], 1
    %1086 = vsyncpa %s1085, 1

</llo_original>
